<compile_context>
chip_gen: v5e
topology: v5e:2x2
jax: 0.10.0
libtpu: 0.0.40
codegen_flags: <defaults>
</compile_context>

<pallas_src>
import jax
import jax.numpy as jnp
from jax.experimental import pallas as pl
from jax.experimental.pallas import tpu as pltpu

_MIB = 1024 * 1024


def _tpu_vmem_bytes() -> int:
    """Best-effort physical VMEM size; conservative 64 MiB (v7x per-TC) fallback."""
    try:
        info = pltpu.get_tpu_info()
        for name in ("vmem_capacity_bytes", "vmem_bytes", "vmem_size_bytes"):
            v = getattr(info, name, None)
            if v:
                return int(v)
    except Exception:
        pass
    return 64 * _MIB


def _pick_fold(rows: int, out_T: int) -> int:
    """Fold factor k (k | rows) making the output tile lane-dense when out_T < 128.

    Prefers the smallest k with k*out_T % 128 == 0, else the smallest k with
    k*out_T >= 128, else the largest small divisor found.
    """
    if out_T >= 128 or rows <= 1:
        return 1
    limit = min(rows, 256)
    divisors = [d for d in range(1, limit + 1) if rows % d == 0]
    mult128 = [d for d in divisors if (d * out_T) % 128 == 0]
    if mult128:
        return mult128[0]
    dense = [d for d in divisors if d * out_T >= 128]
    if dense:
        return dense[0]
    return divisors[-1]


def _pick_sizing(rows_f: int, in_w: int, out_w: int, itemsize: int):
    """Row-block size + vmem limit, gated on the TPU generation's VMEM size."""
    vmem_total = _tpu_vmem_bytes()
    small_vmem = vmem_total <= 64 * _MIB  # v7x: 64 MiB per TensorCore, 2 TCs
    if small_vmem:
        tile_budget = 10 * _MIB     # per (input+output) tile pair
        vmem_limit = 48 * _MIB      # keep double-buffered footprint under 64 MiB
        min_steps = 8               # >= 4 pipelined steps per TensorCore
    else:
        tile_budget = 12 * _MIB     # v5e/v6e: 128 MiB VMEM, single TC
        vmem_limit = 64 * _MIB
        min_steps = 1               # no forced split on single-TC chips

    sub = max(8, 32 // max(itemsize, 1))   # sublane pack: 8 f32 / 16 bf16 / 32 int8
    bytes_per_row = (in_w + out_w) * itemsize
    rb = max(sub, (tile_budget // max(bytes_per_row, 1)) // sub * sub)

    if min_steps > 1 and rows_f >= min_steps * sub:
        per_step = -(-rows_f // min_steps)        # ceil
        per_step = -(-per_step // sub) * sub      # round up to sublane pack
        rb = min(rb, per_step)

    if rb >= rows_f:
        rb = rows_f                               # full-dim block is always legal
    return max(rb, 1), vmem_limit


def _make_pad_kernel(T: int, P: int, k: int):
    if k == 1 and T % 128 == 0:
        # Seam is vreg-aligned: one full-width store, no relayout.
        def kernel(x_ref, o_ref):
            x = x_ref[...]
            pad = jnp.broadcast_to(x[:, T - 1:T], (x.shape[0], P))
            o_ref[...] = jnp.concatenate([x, pad], axis=-1)
        return kernel

    if k == 1:
        # Two-store form: dominant body path stays a straight vld->vst
        # (no lane-shift to assemble seam vregs); pad store is tiny.
        def kernel(x_ref, o_ref):
            x = x_ref[...]
            o_ref[:, :T] = x
            o_ref[:, T:] = jnp.broadcast_to(x[:, T - 1:T], (x.shape[0], P))
        return kernel

    # Folded (out_T < 128): x_ref is (RB, k*T), o_ref is (RB, k*out_T).
    # Assemble the k padded segments in registers, one lane-dense full store.
    def kernel(x_ref, o_ref):
        x = x_ref[...]
        rb = x.shape[0]
        pieces = []
        for j in range(k):  # static Python loop, k <= 128
            seg = x[:, j * T:(j + 1) * T]
            pieces.append(seg)
            pieces.append(jnp.broadcast_to(seg[:, T - 1:T], (rb, P)))
        o_ref[...] = jnp.concatenate(pieces, axis=-1)
    return kernel


def replication_pad1d(x: jnp.ndarray, padding, *, row_block=None) -> jnp.ndarray:
    """x: (B, C, T) -> (B, C, T + padding[-1]), dtype preserved.

    Matches the PyTorch module's forward, which only uses padding[-1]
    (right-side replication); padding[0] is ignored exactly like the spec.
    """
    B, C, T = x.shape
    P = int(padding[-1])
    if P < 0:
        raise ValueError("negative (cropping) padding is not supported")
    if P == 0:
        return x
    out_T = T + P
    rows = B * C
    itemsize = x.dtype.itemsize

    # Lane-dense output: fold k logical rows per block row when out_T < 128.
    k = _pick_fold(rows, out_T)
    rows_f = rows // k
    in_w, out_w = k * T, k * out_T
    x2 = x.reshape(rows_f, in_w)

    rb, vmem_limit = _pick_sizing(rows_f, in_w, out_w, itemsize)
    if row_block is not None:  # test/tuning override
        sub = max(8, 32 // max(itemsize, 1))
        rb = max(sub, (int(row_block) // sub) * sub)
        rb = min(rb, rows_f)
    grid = pl.cdiv(rows_f, rb)

    out2 = pl.pallas_call(
        _make_pad_kernel(T, P, k),
        out_shape=jax.ShapeDtypeStruct((rows_f, out_w), x.dtype),
        grid_spec=pltpu.PrefetchScalarGridSpec(
            num_scalar_prefetch=0,
            grid=(grid,),
            in_specs=[pl.BlockSpec((rb, in_w), lambda r: (r, 0))],
            out_specs=pl.BlockSpec((rb, out_w), lambda r: (r, 0)),
        ),
        compiler_params=pltpu.CompilerParams(
            dimension_semantics=("parallel",),
            vmem_limit_bytes=vmem_limit,
        ),
        cost_estimate=pl.CostEstimate(
            flops=0,
            transcendentals=0,
            bytes_accessed=rows * (T + out_T) * itemsize,
        ),
    )(x2)
    return out2.reshape(B, C, out_T)


def replication_pad1d_ref(x: jnp.ndarray, padding) -> jnp.ndarray:
    """Pure-JAX reference matching the PyTorch forward."""
    P = int(padding[-1])
    replicate = jnp.repeat(x[:, :, -1:], P, axis=-1)
    return jnp.concatenate([x, replicate], axis=-1)


if __name__ == "__main__":
    padding = (0, 8)  # stride/patching-style right pad, as in TimeLLM

    # Case 1: tiny TimeLLM-style shape (out_T < 128 -> folded lane-dense path).
    x1 = jax.random.normal(jax.random.PRNGKey(0), (2, 4, 16), dtype=jnp.float32)
    out1 = jax.block_until_ready(replication_pad1d(x1, padding))
    ref1 = replication_pad1d_ref(x1, padding)
    assert out1.shape == (2, 4, 16 + padding[-1]), out1.shape
    assert out1.dtype == x1.dtype
    assert jnp.allclose(out1, ref1), "Pallas output mismatch vs reference (case 1)"

    # Case 2: out_T < 128 with a non-trivial fold (k=2) and many rows.
    x2 = jax.random.normal(jax.random.PRNGKey(1), (3, 40, 96), dtype=jnp.float32)
    out2 = jax.block_until_ready(replication_pad1d(x2, padding))
    ref2 = replication_pad1d_ref(x2, padding)
    assert out2.shape == ref2.shape and jnp.allclose(out2, ref2)

    # Case 3: out_T >= 128 (two-store path) with a forced multi-step grid and a
    # partial final block.
    x3 = jax.random.normal(jax.random.PRNGKey(2), (2, 10, 160), dtype=jnp.float32)
    out3 = jax.block_until_ready(replication_pad1d(x3, padding, row_block=8))
    ref3 = replication_pad1d_ref(x3, padding)
    assert out3.shape == ref3.shape and jnp.allclose(out3, ref3)

    print("KERNEL_OK")
</pallas_src>

<mosaic_0001>
module attributes {stable_mosaic.version = 11 : i64} {
  func.func @kernel(%arg0: i32, %arg1: memref<1x128xf32, #tpu.memory_space<vmem>>, %arg2: memref<1x192xf32, #tpu.memory_space<vmem>>) attributes {dimension_semantics = [#tpu.dimension_semantics<parallel>], iteration_bounds = array<i64: 1>, scalar_prefetch = 0 : i64, scratch_operands = 0 : i64, tpu.core_type = #tpu.core_type<tc>, window_params = [{transform_indices = @transform_0, window_bounds = array<i64: 1, 128>}, {transform_indices = @transform_1, window_bounds = array<i64: 1, 192>}]} {
    %c0 = arith.constant 0 : index
    %c0_0 = arith.constant 0 : index
    %0 = vector.load %arg1[%c0, %c0_0] : memref<1x128xf32, #tpu.memory_space<vmem>>, vector<1x128xf32>
    %1 = vector.extract_strided_slice %0 {offsets = [0, 0], sizes = [1, 16], strides = [1, 1]} : vector<1x128xf32> to vector<1x16xf32>
    %2 = vector.extract_strided_slice %1 {offsets = [0, 15], sizes = [1, 1], strides = [1, 1]} : vector<1x16xf32> to vector<1x1xf32>
    %3 = vector.shape_cast %2 : vector<1x1xf32> to vector<1x1xf32>
    %4 = vector.broadcast %3 : vector<1x1xf32> to vector<1x8xf32>
    %5 = vector.extract_strided_slice %0 {offsets = [0, 16], sizes = [1, 16], strides = [1, 1]} : vector<1x128xf32> to vector<1x16xf32>
    %6 = vector.extract_strided_slice %5 {offsets = [0, 15], sizes = [1, 1], strides = [1, 1]} : vector<1x16xf32> to vector<1x1xf32>
    %7 = vector.shape_cast %6 : vector<1x1xf32> to vector<1x1xf32>
    %8 = vector.broadcast %7 : vector<1x1xf32> to vector<1x8xf32>
    %9 = vector.extract_strided_slice %0 {offsets = [0, 32], sizes = [1, 16], strides = [1, 1]} : vector<1x128xf32> to vector<1x16xf32>
    %10 = vector.extract_strided_slice %9 {offsets = [0, 15], sizes = [1, 1], strides = [1, 1]} : vector<1x16xf32> to vector<1x1xf32>
    %11 = vector.shape_cast %10 : vector<1x1xf32> to vector<1x1xf32>
    %12 = vector.broadcast %11 : vector<1x1xf32> to vector<1x8xf32>
    %13 = vector.extract_strided_slice %0 {offsets = [0, 48], sizes = [1, 16], strides = [1, 1]} : vector<1x128xf32> to vector<1x16xf32>
    %14 = vector.extract_strided_slice %13 {offsets = [0, 15], sizes = [1, 1], strides = [1, 1]} : vector<1x16xf32> to vector<1x1xf32>
    %15 = vector.shape_cast %14 : vector<1x1xf32> to vector<1x1xf32>
    %16 = vector.broadcast %15 : vector<1x1xf32> to vector<1x8xf32>
    %17 = vector.extract_strided_slice %0 {offsets = [0, 64], sizes = [1, 16], strides = [1, 1]} : vector<1x128xf32> to vector<1x16xf32>
    %18 = vector.extract_strided_slice %17 {offsets = [0, 15], sizes = [1, 1], strides = [1, 1]} : vector<1x16xf32> to vector<1x1xf32>
    %19 = vector.shape_cast %18 : vector<1x1xf32> to vector<1x1xf32>
    %20 = vector.broadcast %19 : vector<1x1xf32> to vector<1x8xf32>
    %21 = vector.extract_strided_slice %0 {offsets = [0, 80], sizes = [1, 16], strides = [1, 1]} : vector<1x128xf32> to vector<1x16xf32>
    %22 = vector.extract_strided_slice %21 {offsets = [0, 15], sizes = [1, 1], strides = [1, 1]} : vector<1x16xf32> to vector<1x1xf32>
    %23 = vector.shape_cast %22 : vector<1x1xf32> to vector<1x1xf32>
    %24 = vector.broadcast %23 : vector<1x1xf32> to vector<1x8xf32>
    %25 = vector.extract_strided_slice %0 {offsets = [0, 96], sizes = [1, 16], strides = [1, 1]} : vector<1x128xf32> to vector<1x16xf32>
    %26 = vector.extract_strided_slice %25 {offsets = [0, 15], sizes = [1, 1], strides = [1, 1]} : vector<1x16xf32> to vector<1x1xf32>
    %27 = vector.shape_cast %26 : vector<1x1xf32> to vector<1x1xf32>
    %28 = vector.broadcast %27 : vector<1x1xf32> to vector<1x8xf32>
    %29 = vector.extract_strided_slice %0 {offsets = [0, 112], sizes = [1, 16], strides = [1, 1]} : vector<1x128xf32> to vector<1x16xf32>
    %30 = vector.extract_strided_slice %29 {offsets = [0, 15], sizes = [1, 1], strides = [1, 1]} : vector<1x16xf32> to vector<1x1xf32>
    %31 = vector.shape_cast %30 : vector<1x1xf32> to vector<1x1xf32>
    %32 = vector.broadcast %31 : vector<1x1xf32> to vector<1x8xf32>
    %33 = tpu.concatenate %1, %4, %5, %8, %9, %12, %13, %16, %17, %20, %21, %24, %25, %28, %29, %32 in 1 : vector<1x16xf32>, vector<1x8xf32>, vector<1x16xf32>, vector<1x8xf32>, vector<1x16xf32>, vector<1x8xf32>, vector<1x16xf32>, vector<1x8xf32>, vector<1x16xf32>, vector<1x8xf32>, vector<1x16xf32>, vector<1x8xf32>, vector<1x16xf32>, vector<1x8xf32>, vector<1x16xf32>, vector<1x8xf32> -> vector<1x192xf32>
    %c0_1 = arith.constant 0 : index
    %c0_2 = arith.constant 0 : index
    %34 = vector.load %arg2[%c0_1, %c0_2] : memref<1x192xf32, #tpu.memory_space<vmem>>, vector<1x192xf32>
    tpu.vector_store %arg2[%c0_1, %c0_2], %33 {strides = array<i32>} : memref<1x192xf32, #tpu.memory_space<vmem>>, vector<1x192xf32>,
    return
  }
  func.func @transform_0(%arg0: i32) -> (i32, i32) {
    %c0_i32 = arith.constant 0 : i32
    %c0_i32_0 = arith.constant 0 : i32
    return %arg0, %c0_i32 : i32, i32
  }
  func.func @transform_1(%arg0: i32) -> (i32, i32) {
    %c0_i32 = arith.constant 0 : i32
    %c0_i32_0 = arith.constant 0 : i32
    return %arg0, %c0_i32 : i32, i32
  }
}

</mosaic_0001>

<llo_original>
// kernel: tpu_custom_call.1
$region0: #{tpu_custom_call.1}
  #allocation0 [shape = 'u32[]', space=smem, size = 0x4, offset = 0x4, fixed_abs, tag = 'smem constant byte address 0x4 - core index']
  #allocation1 [shape = 'u32[72,128]{1,0:T(1,128)}', space=vmem, size = 0x9000, scoped, tag = 'internal scratch']
  %s0 = inlined_call_operand.hbm [shape: f32[1,128], index: 0, kind: input, shape index: {}]
  %s1 = inlined_call_operand.hbm [shape: f32[1,192], index: 1, kind: output, shape index: {}]
  %s2 = sld [smem:[#allocation0]]
  $region18: #{tpu_custom_call.1} parent=0
    _
  %s4 = ssub.s32 1, %s2
  %s5 = scalar_select 0, %s4, %s2
  $region1: #{tpu_custom_call.1} parent=0
    #allocation2 [shape = 'u8[512]{0}', space=vmem, size = 0x400, scoped, tag = 'input window, operand 0, single buffered']
    #allocation3 [shape = 's32[1]{0}', space=sflag, size = 0x4, scoped, tag = 'scoped memory for tpu_custom_call.1']
    #allocation4 [shape = 's32[1]{0}', space=sflag, size = 0x4, scoped, tag = 'scoped memory for tpu_custom_call.1']
    #allocation5 [shape = 'u8[1024]{0}', space=vmem, size = 0x400, scoped, tag = 'output window, operand 0, single buffered']
    %6 = vsyncpa [#allocation3], 0
    %7 = vsyncpa [#allocation4], 0
    // Predicated region
    $region2: #{tpu_custom_call.1} parent=1 // pred_check
      _
    $region3: #{tpu_custom_call.1} parent=1 // pred_check_branch
      %9 = sbr.rel (0) target = $region5
    $region4: #{tpu_custom_call.1} parent=1 // pred_region
      %11 = vsyncadd [#allocation3], 0
      %s13 = sshll.u32 %s0, 4
      %s14 = int_to_ptr.hbm [resolvable:$true] %s13
      %s15 = sshll.u32 [#allocation2], 4
      %s16 = int_to_ptr.vmem [resolvable:$true] %s15
      %18 = dma.hbm_to_vmem [thread:$0]  %s14, 16, %s16, [#allocation3]
    $region5: #{tpu_custom_call.1} parent=1 // pred_fallthru
      _
    // Predicated region
    $region6: #{tpu_custom_call.1} parent=1 // pred_check
      _
    $region7: #{tpu_custom_call.1} parent=1 // pred_check_branch
      %20 = sbr.rel (0) target = $region9
    $region8: #{tpu_custom_call.1} parent=1 // pred_region
      %22 = dma.done [#allocation3], 16
    $region9: #{tpu_custom_call.1} parent=1 // pred_fallthru
      _
    %v23 = vld [vmem:[#allocation2] sm:$0x1]
    %25 = vset.pattern.permute.xlu0 15
    %26 = vperm.xlu0 %25, %v23
    %v27 = vpop.permute.xlu0 %26
    %v29 = vperm.slane %v27, 0
    %30 = vset.pattern.permute.xlu0 31
    %31 = vperm.xlu0 %30, %v23
    %v32 = vpop.permute.xlu0 %31
    %v34 = vperm.slane %v32, 0
    %35 = vset.pattern.permute.xlu0 47
    %36 = vperm.xlu0 %35, %v23
    %v37 = vpop.permute.xlu0 %36
    %v39 = vperm.slane %v37, 0
    %40 = vset.pattern.permute.xlu0 63
    %41 = vperm.xlu0 %40, %v23
    %v42 = vpop.permute.xlu0 %41
    %v44 = vperm.slane %v42, 0
    %45 = vset.pattern.permute.xlu0 79
    %46 = vperm.xlu0 %45, %v23
    %v47 = vpop.permute.xlu0 %46
    %v49 = vperm.slane %v47, 0
    %50 = vset.pattern.permute.xlu0 95
    %51 = vperm.xlu0 %50, %v23
    %v52 = vpop.permute.xlu0 %51
    %v54 = vperm.slane %v52, 0
    %55 = vset.pattern.permute.xlu0 111
    %56 = vperm.xlu0 %55, %v23
    %v57 = vpop.permute.xlu0 %56
    %v59 = vperm.slane %v57, 0
    %60 = vset.pattern.permute.xlu0 127
    %61 = vperm.xlu0 %60, %v23
    %v62 = vpop.permute.xlu0 %61
    %v64 = vperm.slane %v62, 0
    %v65 = vperm.slane %v23, 0
    %66 = vrot.lane.b32.xlu0 %v65, 8
    %v67 = vpop.permute.xlu0 %66
    %69 = vrot.lane.b32.xlu0 %v65, 16
    %v70 = vpop.permute.xlu0 %69
    %72 = vrot.lane.b32.xlu0 %v65, 24
    %v73 = vpop.permute.xlu0 %72
    %75 = vrot.lane.b32.xlu0 %v65, 32
    %v76 = vpop.permute.xlu0 %75
    %78 = vrot.lane.b32.xlu0 %v65, 40
    %v79 = vpop.permute.xlu0 %78
    %81 = vrot.lane.b32.xlu0 %v65, 48
    %v82 = vpop.permute.xlu0 %81
    %84 = vrot.lane.b32.xlu0 %v65, 56
    %v85 = vpop.permute.xlu0 %84
    %vm87 = vcmask 130048
    %v88 = vsel %vm87, %v23, %v29
    %vm89 = vcmask 195584
    %v90 = vsel %vm89, %v88, %v67
    %vm91 = vcmask 326656
    %v92 = vsel %vm91, %v90, %v34
    %vm93 = vcmask 392192
    %v94 = vsel %vm93, %v92, %v70
    %vm95 = vcmask 523264
    %v96 = vsel %vm95, %v94, %v39
    %vm97 = vcmask 588800
    %v98 = vsel %vm97, %v96, %v73
    %vm99 = vcmask 719872
    %v100 = vsel %vm99, %v98, %v44
    %vm101 = vcmask 785408
    %v102 = vsel %vm101, %v100, %v76
    %vm103 = vcmask 916480
    %v104 = vsel %vm103, %v102, %v49
    %vm105 = vcmask 982016
    %v106 = vsel %vm105, %v104, %v79
    %vm107 = vcmask 64512
    %v108 = vsel %vm107, %v79, %v54
    %v109 = vsel %vm87, %v108, %v82
    %vm110 = vcmask 261120
    %v111 = vsel %vm110, %v109, %v59
    %v112 = vsel %vm91, %v111, %v85
    %vm113 = vcmask 457728
    %v114 = vsel %vm113, %v112, %v64
    %v117 = vrot.slane %v114, 7
    %vm118 = vcmask 1040384
    %v119 = vsel %vm118, %v106, %v117
    %v121 = vlaneseq
    %vm122 = vcmp.ge.s32.totalorder %v121, 0
    %vm123 = vcmp.lt.s32.totalorder %v121, 192
    %vm124 = vmand %vm122, %vm123
    %125 = vst.msk [vmem:[#allocation5] sm:$0x3] %vm124, %v119
    // Predicated region
    $region10: #{tpu_custom_call.1} parent=1 // pred_check
      _
    $region11: #{tpu_custom_call.1} parent=1 // pred_check_branch
      %127 = sbr.rel (0) target = $region13
    $region12: #{tpu_custom_call.1} parent=1 // pred_region
      %129 = vsyncadd [#allocation4], 0
      %s131 = sshll.u32 [#allocation5], 4
      %s132 = int_to_ptr.vmem [resolvable:$true] %s131
      %s133 = sshll.u32 %s1, 4
      %s134 = int_to_ptr.hbm [resolvable:$true] %s133
      %136 = dma.vmem_to_hbm [thread:$0]  %s132, 32, %s134, [#allocation4]
    $region13: #{tpu_custom_call.1} parent=1 // pred_fallthru
      _
    // Predicated region
    $region14: #{tpu_custom_call.1} parent=1 // pred_check
      _
    $region15: #{tpu_custom_call.1} parent=1 // pred_check_branch
      %138 = sbr.rel (0) target = $region17
    $region16: #{tpu_custom_call.1} parent=1 // pred_region
      %140 = dma.done [#allocation4], 32
    $region17: #{tpu_custom_call.1} parent=1 // pred_fallthru
      _
    %141 = vsyncpa [#allocation3], 1
    %142 = vsyncpa [#allocation4], 1

</llo_original>
